<compile_context>
chip_gen: v7x
topology: tpu7x:2x2x1
jax: 0.10.0
libtpu: 0.0.40
codegen_flags: <defaults>
</compile_context>

<pallas_src>
import math

import jax
import jax.numpy as jnp
from jax import lax
from jax.experimental import pallas as pl
from jax.experimental.pallas import tpu as pltpu


def _round_up(x, m):
    return ((x + m - 1) // m) * m


def _score_kernel(x_ref, kq_ref, bias_ref, scores_ref):
    """One node tile: scores[h, i] = <kq_h, x_i> + bias_h (lane-dense out)."""
    scores = lax.dot_general(
        kq_ref[...], x_ref[...],
        dimension_numbers=(((1,), (1,)), ((), ())),   # contract on E
        preferred_element_type=jnp.float32)
    scores_ref[...] = scores + bias_ref[...]          # (H, tile_n) f32


def attention_assignment(node_embeddings, hub_indices, params, *, tile_n=512):
    """Returns assignments (N,) matching the PyTorch module's forward."""
    N, E = node_embeddings.shape
    H = int(hub_indices.shape[0])

    # ---- fold the query projection into the tiny hub-side tensors ----------
    hub_emb = node_embeddings[hub_indices]                            # (H, E)
    k = hub_emb @ params["wk"].T + params["bk"]                       # (H, E)
    kq = (k @ params["wq"]).astype(jnp.float32)                       # (H, E)
    bias = (k @ params["bq"]).reshape(H, 1).astype(jnp.float32)       # (H, 1)
    # NOTE: softmax and 1/sqrt(E) are monotone -> argmax over raw scores.

    x = node_embeddings.astype(jnp.float32)           # no copy if already f32

    # Node tile: multiple of 128 lanes on the output axis; keep the
    # double-buffered f32 x tile within ~16 MiB of VMEM at any E.
    vmem_budget = 16 * 1024 * 1024
    max_tile = max(128, ((vmem_budget // (2 * E * 4)) // 128) * 128)
    tile = max(128, min(tile_n, max_tile, _round_up(N, 128)))
    num_tiles = pl.cdiv(N, tile)
    n_pad = num_tiles * tile                           # output padded, inputs not

    scores = pl.pallas_call(
        _score_kernel,
        out_shape=jax.ShapeDtypeStruct((H, n_pad), jnp.float32),
        grid_spec=pltpu.PrefetchScalarGridSpec(
            num_scalar_prefetch=0,
            grid=(num_tiles,),
            in_specs=[
                pl.BlockSpec((tile, E), lambda i: (i, 0)),   # node tile (f32)
                pl.BlockSpec((H, E), lambda i: (0, 0)),      # folded hub keys
                pl.BlockSpec((H, 1), lambda i: (0, 0)),      # per-hub bq.K bias
            ],
            out_specs=pl.BlockSpec((H, tile), lambda i: (0, i)),  # lane-dense
        ),
        compiler_params=pltpu.CompilerParams(
            dimension_semantics=("parallel",),   # shard node tiles across TCs
        ),
    )(x, kq, bias)

    scores = scores[:, :N]                        # drop padded tail columns
    best_slot = jnp.argmax(scores, axis=0)        # first-occurrence tie-break
    best_hub = hub_indices[best_slot]
    ids = jnp.arange(N, dtype=hub_indices.dtype)
    is_hub = jnp.isin(ids, hub_indices)
    return jnp.where(is_hub, ids, best_hub)


def _ref_forward(node_embeddings, hub_indices, params):
    """Pure-JAX f32 reference mirroring the PyTorch loop (vectorized)."""
    N, E = node_embeddings.shape
    hub_emb = node_embeddings[hub_indices]
    k = hub_emb @ params["wk"].T + params["bk"]
    q = node_embeddings @ params["wq"].T + params["bq"]
    scores = (q @ k.T) / math.sqrt(E)
    attn = jax.nn.softmax(scores, axis=-1)        # monotone: argmax unchanged
    best = hub_indices[jnp.argmax(attn, axis=-1)]
    ids = jnp.arange(N, dtype=hub_indices.dtype)
    return jnp.where(jnp.isin(ids, hub_indices), ids, best)


def init_params(key, embedding_size):
    """Deterministic parameter init matching the nn.Linear shapes in __init__."""
    ks = jax.random.split(key, 8)
    s = 0.02
    return {
        "wq": s * jax.random.normal(ks[0], (embedding_size, embedding_size), jnp.float32),
        "bq": s * jax.random.normal(ks[1], (embedding_size,), jnp.float32),
        "wk": s * jax.random.normal(ks[2], (embedding_size, embedding_size), jnp.float32),
        "bk": s * jax.random.normal(ks[3], (embedding_size,), jnp.float32),
        # TODO(synk): value_proj / out_proj are dead code in forward (context
        # is discarded, out_proj unused); kept only for parameter parity.
        "wv": s * jax.random.normal(ks[4], (embedding_size, embedding_size), jnp.float32),
        "bv": s * jax.random.normal(ks[5], (embedding_size,), jnp.float32),
        "wo": s * jax.random.normal(ks[6], (1, embedding_size), jnp.float32),
        "bo": s * jax.random.normal(ks[7], (1,), jnp.float32),
    }


if __name__ == "__main__":
    # Small shapes consistent with the module (module default E=4096; use 256
    # here).  N=448 with tile_n=128 gives a 4-step parallel grid whose final
    # node tile is partial, exercising the no-pad boundary path.
    N, E = 448, 256
    key = jax.random.PRNGKey(0)
    k_param, k_data = jax.random.split(key)

    params = init_params(k_param, E)
    node_embeddings = jax.random.normal(k_data, (N, E), jnp.float32)
    hub_indices = jnp.array([7, 133, 260, 441], dtype=jnp.int32)

    assignments = attention_assignment(node_embeddings, hub_indices, params,
                                       tile_n=128)
    assignments = jax.block_until_ready(assignments)

    ref = _ref_forward(node_embeddings, hub_indices, params)
    assert assignments.shape == (N,)
    assert bool(jnp.all(assignments == ref)), (assignments, ref)

    print("KERNEL_OK")
</pallas_src>

<mosaic_0001>
module attributes {stable_mosaic.version = 11 : i64} {
  func.func @_score_kernel(%arg0: i32, %arg1: memref<128x256xf32, #tpu.memory_space<vmem>>, %arg2: memref<4x256xf32, #tpu.memory_space<vmem>>, %arg3: memref<4x1xf32, #tpu.memory_space<vmem>>, %arg4: memref<4x128xf32, #tpu.memory_space<vmem>>) attributes {dimension_semantics = [#tpu.dimension_semantics<parallel>], iteration_bounds = array<i64: 4>, scalar_prefetch = 0 : i64, scratch_operands = 0 : i64, tpu.core_type = #tpu.core_type<tc>, window_params = [{transform_indices = @transform_0, window_bounds = array<i64: 128, 256>}, {pipeline_mode = #tpu.pipeline_mode<synchronous>, transform_indices = @transform_1, window_bounds = array<i64: 4, 256>}, {pipeline_mode = #tpu.pipeline_mode<synchronous>, transform_indices = @transform_2, window_bounds = array<i64: 4, 1>}, {transform_indices = @transform_3, window_bounds = array<i64: 4, 128>}]} {
    %c0 = arith.constant 0 : index
    %c0_0 = arith.constant 0 : index
    %0 = vector.load %arg2[%c0, %c0_0] : memref<4x256xf32, #tpu.memory_space<vmem>>, vector<4x256xf32>
    %c0_1 = arith.constant 0 : index
    %c0_2 = arith.constant 0 : index
    %1 = vector.load %arg1[%c0_1, %c0_2] : memref<128x256xf32, #tpu.memory_space<vmem>>, vector<128x256xf32>
    %cst = arith.constant dense<0.000000e+00> : vector<4x128xf32>
    %2 = tpu.matmul %0, %1, %cst {dimension_numbers = #tpu.dot_dimension_numbers<[1], [1], [0], [0], [0, 0, 1, 0], [], []>} : vector<4x256xf32>, vector<128x256xf32>, vector<4x128xf32> -> vector<4x128xf32>
    %c0_3 = arith.constant 0 : index
    %c0_4 = arith.constant 0 : index
    %3 = vector.load %arg3[%c0_3, %c0_4] : memref<4x1xf32, #tpu.memory_space<vmem>>, vector<4x1xf32>
    %4 = vector.broadcast %3 : vector<4x1xf32> to vector<4x128xf32>
    %5 = arith.addf %2, %4 : vector<4x128xf32>
    %c0_5 = arith.constant 0 : index
    %c0_6 = arith.constant 0 : index
    %6 = vector.load %arg4[%c0_5, %c0_6] : memref<4x128xf32, #tpu.memory_space<vmem>>, vector<4x128xf32>
    tpu.vector_store %arg4[%c0_5, %c0_6], %5 {strides = array<i32>} : memref<4x128xf32, #tpu.memory_space<vmem>>, vector<4x128xf32>,
    return
  }
  func.func @transform_0(%arg0: i32) -> (i32, i32) {
    %c0_i32 = arith.constant 0 : i32
    %c0_i32_0 = arith.constant 0 : i32
    return %arg0, %c0_i32 : i32, i32
  }
  func.func @transform_1(%arg0: i32) -> (i32, i32) {
    %c0_i32 = arith.constant 0 : i32
    %c0_i32_0 = arith.constant 0 : i32
    %c0_i32_1 = arith.constant 0 : i32
    return %c0_i32, %c0_i32_0 : i32, i32
  }
  func.func @transform_2(%arg0: i32) -> (i32, i32) {
    %c0_i32 = arith.constant 0 : i32
    %c0_i32_0 = arith.constant 0 : i32
    %c0_i32_1 = arith.constant 0 : i32
    return %c0_i32, %c0_i32_0 : i32, i32
  }
  func.func @transform_3(%arg0: i32) -> (i32, i32) {
    %c0_i32 = arith.constant 0 : i32
    %c0_i32_0 = arith.constant 0 : i32
    return %c0_i32, %arg0 : i32, i32
  }
}

</mosaic_0001>

<llo_original>
// kernel: tpu_custom_call.1
$region0: #{tpu_custom_call.1}
  #allocation0 [shape = 'u32[]', space=smem, size = 0x4, offset = 0x4, fixed_abs, tag = 'smem constant byte address 0x4 - core index']
  #allocation1 [shape = 'u32[144,128]{1,0:T(1,128)}', space=vmem, size = 0x12000, scoped, tag = 'internal scratch']
  %s0 = inlined_call_operand.hbm [shape: f32[448,256], index: 0, kind: input, shape index: {}]
  %s1 = inlined_call_operand.vmem [shape: f32[4,256], index: 1, kind: input, shape index: {}]
  %s2 = inlined_call_operand.vmem [shape: f32[4,1], index: 2, kind: input, shape index: {}]
  %s3 = inlined_call_operand.hbm [shape: f32[4,512], index: 3, kind: output, shape index: {}]
  %s4 = sld [smem:[#allocation0]]
  $region49: #{tpu_custom_call.1} parent=0
    _
  %s6 = ssub.s32 1, %s4
  %s7 = scalar_select 0, %s6, %s4
  $region1: #{tpu_custom_call.1} parent=0
    #allocation2 [shape = 'u8[262144]{0}', space=vmem, size = 0x40000, scoped, tag = 'input window, operand 0']
    #allocation3 [shape = 's32[2]{0}', space=sflag, size = 0x8, scoped, tag = 'scoped memory for tpu_custom_call.1']
    #allocation4 [shape = 's32[2]{0}', space=sflag, size = 0x8, scoped, tag = 'scoped memory for tpu_custom_call.1']
    #allocation5 [shape = 'u8[4096]{0}', space=vmem, size = 0x1000, scoped, tag = 'output window, operand 0']
    %8 = vsyncpa [#allocation3], 0
    %s9 = scalar_lea.sflag [#allocation3], 1
    %10 = vsyncpa %s9, 0
    %11 = vsyncpa [#allocation4], 0
    %s12 = scalar_lea.sflag [#allocation4], 1
    %13 = vsyncpa %s12, 0
    loop: start=0, step=1, limit=6
    $region2: #{tpu_custom_call.1} parent=1 // loop_pre_header
      _
    $region3: #{tpu_custom_call.1} parent=1 // loop_header
      %s15 = sphi 0, %s19
      %p16 = scmp.ge.s32.totalorder %s15, 6
      %s25 = sphi 0, %s27
      %s28 = sphi 0, %s25
      %s29 = sphi 0, %s28
      %s45 = sphi 0, %s29
      %s49 = sphi 0, %s49
      %s51 = sphi 0, %s49
      %s52 = sphi 0, %s51
      %s66 = sphi 0, %s52
      %s70 = sphi 0, %s70
      %s72 = sphi 0, %s70
      %s73 = sphi 0, %s72
      %s87 = sphi 0, %s73
      %s93 = sphi 0, %s95
      %s96 = sphi 0, %s93
      %s97 = sphi 0, %s96
      %s113 = sphi 0, %s97
    $region4: #{tpu_custom_call.1} parent=1 // loop_header_branch
      %18 = sbr.rel (%p16) target = $region8
    $region5: #{tpu_custom_call.1} parent=1 // loop_body
      %s20 = ssub.s32 %s15, 1
      %s21 = ssub.s32 %s15, 2
      %s22 = sadd.s32 %s15, 1
      %s23 = ssub.s32 %s15, %s22
      %p24 = scmp.eq.s32.totalorder %s23, 0
      %s26 = sadd.s32 %s25, 1
      %s27 = scalar_select %p24, %s25, %s26
      %p30 = pneg %p24
      %p31 = scmp.eq.s32.totalorder %s15, 3
      %p32 = por %p30, %p31
      %p33 = scmp.ne.s32.totalorder %s25, %s28
      %p34 = scmp.eq.s32.totalorder %s15, 0
      %p35 = por %p33, %p34
      %p36 = scmp.ne.s32.totalorder %s25, %s28
      %p37 = scmp.eq.s32.totalorder %s20, 3
      %p38 = por %p36, %p37
      %p39 = scmp.ne.s32.totalorder %s28, %s29
      %p40 = scmp.eq.s32.totalorder %s20, 0
      %p41 = por %p39, %p40
      %p42 = scmp.ne.s32.totalorder %s28, %s29
      %p43 = scmp.eq.s32.totalorder %s21, 3
      %p44 = por %p42, %p43
      %p46 = scmp.ne.s32.totalorder %s29, %s45
      %p47 = scmp.eq.s32.totalorder %s21, 0
      %p48 = por %p46, %p47
      %s50 = sadd.s32 %s49, 1
      %p53 = scmp.eq.s32.totalorder %s15, 3
      %p54 = scmp.ne.s32.totalorder %s49, %s51
      %p55 = scmp.eq.s32.totalorder %s15, 0
      %p56 = por %p54, %p55
      %p57 = scmp.ne.s32.totalorder %s49, %s51
      %p58 = scmp.eq.s32.totalorder %s20, 3
      %p59 = por %p57, %p58
      %p60 = scmp.ne.s32.totalorder %s51, %s52
      %p61 = scmp.eq.s32.totalorder %s20, 0
      %p62 = por %p60, %p61
      %p63 = scmp.ne.s32.totalorder %s51, %s52
      %p64 = scmp.eq.s32.totalorder %s21, 3
      %p65 = por %p63, %p64
      %p67 = scmp.ne.s32.totalorder %s52, %s66
      %p68 = scmp.eq.s32.totalorder %s21, 0
      %p69 = por %p67, %p68
      %s71 = sadd.s32 %s70, 1
      %p74 = scmp.eq.s32.totalorder %s15, 3
      %p75 = scmp.ne.s32.totalorder %s70, %s72
      %p76 = scmp.eq.s32.totalorder %s15, 0
      %p77 = por %p75, %p76
      %p78 = scmp.ne.s32.totalorder %s70, %s72
      %p79 = scmp.eq.s32.totalorder %s20, 3
      %p80 = por %p78, %p79
      %p81 = scmp.ne.s32.totalorder %s72, %s73
      %p82 = scmp.eq.s32.totalorder %s20, 0
      %p83 = por %p81, %p82
      %p84 = scmp.ne.s32.totalorder %s72, %s73
      %p85 = scmp.eq.s32.totalorder %s21, 3
      %p86 = por %p84, %p85
      %p88 = scmp.ne.s32.totalorder %s73, %s87
      %p89 = scmp.eq.s32.totalorder %s21, 0
      %p90 = por %p88, %p89
      %s91 = ssub.s32 %s15, %s22
      %p92 = scmp.eq.s32.totalorder %s91, 0
      %s94 = sadd.s32 %s93, 1
      %s95 = scalar_select %p92, %s93, %s94
      %p98 = pneg %p92
      %p99 = scmp.eq.s32.totalorder %s15, 3
      %p100 = por %p98, %p99
      %p101 = scmp.ne.s32.totalorder %s93, %s96
      %p102 = scmp.eq.s32.totalorder %s15, 0
      %p103 = por %p101, %p102
      %p104 = scmp.ne.s32.totalorder %s93, %s96
      %p105 = scmp.eq.s32.totalorder %s20, 3
      %p106 = por %p104, %p105
      %p107 = scmp.ne.s32.totalorder %s96, %s97
      %p108 = scmp.eq.s32.totalorder %s20, 0
      %p109 = por %p107, %p108
      %p110 = scmp.ne.s32.totalorder %s96, %s97
      %p111 = scmp.eq.s32.totalorder %s21, 3
      %p112 = por %p110, %p111
      %p114 = scmp.ne.s32.totalorder %s97, %s113
      %p115 = scmp.eq.s32.totalorder %s21, 0
      %p116 = por %p114, %p115
      %p117 = scmp.le.s32.totalorder 1, %s15
      %p118 = scmp.lt.s32.totalorder %s15, 5
      %p119 = pnand %p117, %p118
      %p120 = pneg %p119
      // Predicated region
      $region9: #{tpu_custom_call.1} parent=5 // pred_check
        _
      $region10: #{tpu_custom_call.1} parent=5 // pred_check_branch
        %122 = sbr.rel (%p119) target = $region12
      $region11: #{tpu_custom_call.1} parent=5 // pred_region
        %s123 = ssub.s32 %s15, 1
        // Predicated region
        $region13: #{tpu_custom_call.1} parent=11 // pred_check
          %p124 = pneg %p62
        $region14: #{tpu_custom_call.1} parent=11 // pred_check_branch
          %126 = sbr.rel (%p124) target = $region16
        $region15: #{tpu_custom_call.1} parent=11 // pred_region
          _
        $region16: #{tpu_custom_call.1} parent=11 // pred_fallthru
          _
        // Predicated region
        $region17: #{tpu_custom_call.1} parent=11 // pred_check
          %p127 = pneg %p83
        $region18: #{tpu_custom_call.1} parent=11 // pred_check_branch
          %129 = sbr.rel (%p127) target = $region20
        $region19: #{tpu_custom_call.1} parent=11 // pred_region
          _
        $region20: #{tpu_custom_call.1} parent=11 // pred_fallthru
          _
      $region12: #{tpu_custom_call.1} parent=5 // pred_fallthru
        _
      %p130 = scmp.lt.s32.totalorder %s15, 4
      // Predicated region
      $region21: #{tpu_custom_call.1} parent=5 // pred_check
        %p131 = pneg %p130
      $region22: #{tpu_custom_call.1} parent=5 // pred_check_branch
        %133 = sbr.rel (%p131) target = $region24
      $region23: #{tpu_custom_call.1} parent=5 // pred_region
        // Predicated region
        $region25: #{tpu_custom_call.1} parent=23 // pred_check
          %p134 = pneg %p35
        $region26: #{tpu_custom_call.1} parent=23 // pred_check_branch
          %136 = sbr.rel (%p134) target = $region28
        $region27: #{tpu_custom_call.1} parent=23 // pred_region
          %s137 = sand.u32 %s25, 1
          %s138 = scalar_lea.sflag [#allocation3], %s137
          %s139 = sand.u32 %s25, 1
          %s140 = smul.addr %s139, 256
          %s141 = scalar_lea.vmem [#allocation2], %s140
          %s142 = smul.u32 16, %s15
          %s143 = ssub.s32 56, %s142
          %p144 = scmp.lt.s32.totalorder %s143, 16
          %s145 = scalar_select %p144, %s143, 16
          %s146 = smul.u32 128, %s145
          %s147 = smul.u32 %s146, 2
          %s149 = ssub.s32 4096, %s147
          %150 = vsyncadd %s138, %s149
          %p151 = scmp.ne.s32.totalorder 0, %s147
          %s152 = smul.addr %s142, 2
          %s153 = smul.addr %s152, 128
          %s154 = scalar_lea.hbm %s0, %s153
          %s155 = smul.u32 16, %s145
          %s156 = sshll.u32 %s141, 4
          %s157 = int_to_ptr.vmem [resolvable:$true] %s156
          %s158 = sshll.u32 %s155, 4
          %162 = dma.hbm_to_vmem [thread:$0]  (%p151), %s154, %s158, %s157, %s138, 256, 256, 16
        $region28: #{tpu_custom_call.1} parent=23 // pred_fallthru
          _
      $region24: #{tpu_custom_call.1} parent=5 // pred_fallthru
        _
      %p163 = scmp.le.s32.totalorder 1, %s15
      %p164 = scmp.lt.s32.totalorder %s15, 5
      %p165 = pnand %p163, %p164
      %p166 = pneg %p165
      // Predicated region
      $region29: #{tpu_custom_call.1} parent=5 // pred_check
        _
      $region30: #{tpu_custom_call.1} parent=5 // pred_check_branch
        %168 = sbr.rel (%p165) target = $region32
      $region31: #{tpu_custom_call.1} parent=5 // pred_region
        %s169 = ssub.s32 %s15, 1
        %s170 = sand.u32 %s28, 1
        %s171 = scalar_lea.sflag [#allocation3], %s170
        %s172 = sand.u32 %s28, 1
        %s173 = smul.addr %s172, 256
        %s174 = scalar_lea.vmem [#allocation2], %s173
        // Predicated region
        $region33: #{tpu_custom_call.1} parent=31 // pred_check
          %p175 = pneg %p41
        $region34: #{tpu_custom_call.1} parent=31 // pred_check_branch
          %177 = sbr.rel (%p175) target = $region36
        $region35: #{tpu_custom_call.1} parent=31 // pred_region
          %178 = dma.done %s171, 4096
        $region36: #{tpu_custom_call.1} parent=31 // pred_fallthru
          _
        %s179 = sand.u32 %s28, 1
        %s180 = scalar_lea.sflag [#allocation3], %s179
        %s181 = sand.u32 %s28, 1
        %s182 = smul.addr %s181, 256
        %s183 = scalar_lea.vmem [#allocation2], %s182
        %p184 = pneg %p41
        %p185 = pneg %p38
        %p186 = pneg %p62
        %p187 = pneg %p59
        %p188 = pneg %p83
        %p189 = pneg %p80
        %p190 = pneg %p109
        %p191 = pneg %p106
        %s192 = sand.u32 %s96, 1
        %s193 = scalar_lea.sflag [#allocation4], %s192
        %s194 = sand.u32 %s96, 1
        %s195 = smul.addr %s194, 4
        %s196 = scalar_lea.vmem [#allocation5], %s195
        %s197 = smul.u32 16, %s20
        %s198 = ssub.s32 56, %s197
        %p199 = scmp.lt.s32.totalorder %s198, 16
        %s200 = scalar_select %p199, %s198, 16
        %s201 = smul.u32 128, %s200
        %s202 = smul.u32 %s201, 2
        %v203 = vld [vmem:[%s1] sm:$0xff]
        %v204 = vld [vmem:[%s174] sm:$0xff]
        %v205 = vld [vmem:[%s174 + $0x8] sm:$0xff]
        %v206 = vld [vmem:[%s174 + $0x10] sm:$0xff]
        %v207 = vld [vmem:[%s174 + $0x18] sm:$0xff]
        %v208 = vld [vmem:[%s174 + $0x20] sm:$0xff]
        %v209 = vld [vmem:[%s174 + $0x28] sm:$0xff]
        %v210 = vld [vmem:[%s174 + $0x30] sm:$0xff]
        %v211 = vld [vmem:[%s174 + $0x38] sm:$0xff]
        %v212 = vld [vmem:[%s174 + $0x40] sm:$0xff]
        %v213 = vld [vmem:[%s174 + $0x48] sm:$0xff]
        %v214 = vld [vmem:[%s174 + $0x50] sm:$0xff]
        %v215 = vld [vmem:[%s174 + $0x58] sm:$0xff]
        %v216 = vld [vmem:[%s174 + $0x60] sm:$0xff]
        %v217 = vld [vmem:[%s174 + $0x68] sm:$0xff]
        %v218 = vld [vmem:[%s174 + $0x70] sm:$0xff]
        %v219 = vld [vmem:[%s174 + $0x78] sm:$0xff]
        %v220 = vld [vmem:[%s174 + $0x80] sm:$0xff]
        %v221 = vld [vmem:[%s174 + $0x88] sm:$0xff]
        %v222 = vld [vmem:[%s174 + $0x90] sm:$0xff]
        %v223 = vld [vmem:[%s174 + $0x98] sm:$0xff]
        %v224 = vld [vmem:[%s174 + $0xa0] sm:$0xff]
        %v225 = vld [vmem:[%s174 + $0xa8] sm:$0xff]
        %v226 = vld [vmem:[%s174 + $0xb0] sm:$0xff]
        %v227 = vld [vmem:[%s174 + $0xb8] sm:$0xff]
        %v228 = vld [vmem:[%s174 + $0xc0] sm:$0xff]
        %v229 = vld [vmem:[%s174 + $0xc8] sm:$0xff]
        %v230 = vld [vmem:[%s174 + $0xd0] sm:$0xff]
        %v231 = vld [vmem:[%s174 + $0xd8] sm:$0xff]
        %v232 = vld [vmem:[%s174 + $0xe0] sm:$0xff]
        %v233 = vld [vmem:[%s174 + $0xe8] sm:$0xff]
        %v234 = vld [vmem:[%s174 + $0xf0] sm:$0xff]
        %v235 = vld [vmem:[%s174 + $0xf8] sm:$0xff]
        %v236 = vld [vmem:[%s2] sm:$0xf]
        %238 = vset.pattern.permute.xlu0 0
        %239 = vperm.xlu0 %238, %v236
        %v240 = vpop.permute.xlu0 %239
        %v243 = vcombine.high %v203, %v203
        %245 = vmatprep.subr.mxu0 %v205
        %246 = vmatpush1.xpose.msra.mxu0 %v204
        %247 = vmatprep.subr.mxu0 %v207
        %248 = vmatpush1.xpose.msra.mxu0 %v206
        %249 = vmatprep.subr.mxu0 %v209
        %250 = vmatpush1.xpose.msra.mxu0 %v208
        %251 = vmatprep.subr.mxu0 %v211
        %252 = vmatpush1.xpose.msra.mxu0 %v210
        %253 = vmatprep.subr.mxu0 %v213
        %254 = vmatpush1.xpose.msra.mxu0 %v212
        %255 = vmatprep.subr.mxu0 %v215
        %256 = vmatpush1.xpose.msra.mxu0 %v214
        %257 = vmatprep.subr.mxu0 %v217
        %258 = vmatpush1.xpose.msra.mxu0 %v216
        %259 = vmatprep.subr.mxu0 %v219
        %260 = vmatpush1.xpose.msra.mxu0 %v218
        %261 = vmatprep.subr.mxu0 %v221
        %262 = vmatpush1.xpose.msra.mxu0 %v220
        %263 = vmatprep.subr.mxu0 %v223
        %264 = vmatpush1.xpose.msra.mxu0 %v222
        %265 = vmatprep.subr.mxu0 %v225
        %266 = vmatpush1.xpose.msra.mxu0 %v224
        %267 = vmatprep.subr.mxu0 %v227
        %268 = vmatpush1.xpose.msra.mxu0 %v226
        %269 = vmatprep.subr.mxu0 %v229
        %270 = vmatpush1.xpose.msra.mxu0 %v228
        %271 = vmatprep.subr.mxu0 %v231
        %272 = vmatpush1.xpose.msra.mxu0 %v230
        %273 = vmatprep.subr.mxu0 %v233
        %274 = vmatpush1.xpose.msra.mxu0 %v232
        %275 = vmatprep.subr.mxu0 %v235
        %276 = vmatpush1.xpose.msra.mxu0 %v234
        %277 = vmatprep.subr.mxu0 0.0
        %278 = vmatpush1.xpose.msra.mxu0 0.0
        %279 = vmatprep.subr.mxu0 0.0
        %280 = vmatpush1.xpose.msra.mxu0 0.0
        %281 = vmatprep.subr.mxu0 0.0
        %282 = vmatpush1.xpose.msra.mxu0 0.0
        %283 = vmatprep.subr.mxu0 0.0
        %284 = vmatpush1.xpose.msra.mxu0 0.0
        %285 = vmatprep.subr.mxu0 0.0
        %286 = vmatpush1.xpose.msra.mxu0 0.0
        %287 = vmatprep.subr.mxu0 0.0
        %288 = vmatpush1.xpose.msra.mxu0 0.0
        %289 = vmatprep.subr.mxu0 0.0
        %290 = vmatpush1.xpose.msra.mxu0 0.0
        %291 = vmatprep.subr.mxu0 0.0
        %292 = vmatpush1.xpose.msra.mxu0 0.0
        %293 = vmatprep.subr.mxu0 0.0
        %294 = vmatpush1.xpose.msra.mxu0 0.0
        %295 = vmatprep.subr.mxu0 0.0
        %296 = vmatpush1.xpose.msra.mxu0 0.0
        %297 = vmatprep.subr.mxu0 0.0
        %298 = vmatpush1.xpose.msra.mxu0 0.0
        %299 = vmatprep.subr.mxu0 0.0
        %300 = vmatpush1.xpose.msra.mxu0 0.0
        %301 = vmatprep.subr.mxu0 0.0
        %302 = vmatpush1.xpose.msra.mxu0 0.0
        %303 = vmatprep.subr.mxu0 0.0
        %304 = vmatpush1.xpose.msra.mxu0 0.0
        %305 = vmatprep.subr.mxu0 0.0
        %306 = vmatpush1.xpose.msra.mxu0 0.0
        %307 = vmatprep.subr.mxu0 0.0
        %308 = vmatpush1.xpose.msra.mxu0 0.0
        %309 = vmatprep.mubr.f32.mxu0 %v243
        %310 = vmatmul.mubr.f32.gmra.mrb[0].mxu0 %v203
        %v311 = vpop.f32.mrb[0].mxu0
        %v312 = vadd.f32 %v240, %v311
        %v313 = vpop.f32.mrb[0].mxu0
        %314 = vdwg.mxu0
        %315 = vst [vmem:[%s196] sm:$0xf] %v312
        %s316 = sand.u32 %s96, 1
        %s317 = scalar_lea.sflag [#allocation4], %s316
        %s318 = sand.u32 %s96, 1
        %s319 = smul.addr %s318, 4
        %s320 = scalar_lea.vmem [#allocation5], %s319
        // Predicated region
        $region37: #{tpu_custom_call.1} parent=31 // pred_check
          %p321 = pneg %p106
        $region38: #{tpu_custom_call.1} parent=31 // pred_check_branch
          %323 = sbr.rel (%p321) target = $region40
        $region39: #{tpu_custom_call.1} parent=31 // pred_region
          %s325 = ssub.s32 64, 64
          %326 = vsyncadd %s317, %s325
          %s327 = smul.addr %s20, 64
          %s328 = scalar_lea.hbm %s3, %s327
          %s330 = sshll.u32 %s320, 4
          %s331 = int_to_ptr.vmem [resolvable:$true] %s330
          %333 = dma.vmem_to_hbm [thread:$0]  %s331, 64, %s328, %s317
        $region40: #{tpu_custom_call.1} parent=31 // pred_fallthru
          _
      $region32: #{tpu_custom_call.1} parent=5 // pred_fallthru
        _
      %p334 = scmp.le.s32.totalorder 2, %s15
      // Predicated region
      $region41: #{tpu_custom_call.1} parent=5 // pred_check
        %p335 = pneg %p334
      $region42: #{tpu_custom_call.1} parent=5 // pred_check_branch
        %337 = sbr.rel (%p335) target = $region44
      $region43: #{tpu_custom_call.1} parent=5 // pred_region
        %s338 = ssub.s32 %s15, 2
        // Predicated region
        $region45: #{tpu_custom_call.1} parent=43 // pred_check
          %p339 = pneg %p112
        $region46: #{tpu_custom_call.1} parent=43 // pred_check_branch
          %341 = sbr.rel (%p339) target = $region48
        $region47: #{tpu_custom_call.1} parent=43 // pred_region
          %s342 = sand.u32 %s97, 1
          %s343 = scalar_lea.sflag [#allocation4], %s342
          %s344 = sand.u32 %s97, 1
          %s345 = smul.addr %s344, 4
          %s346 = scalar_lea.vmem [#allocation5], %s345
          %347 = dma.done %s343, 64
        $region48: #{tpu_custom_call.1} parent=43 // pred_fallthru
          _
      $region44: #{tpu_custom_call.1} parent=5 // pred_fallthru
        _
    $region6: #{tpu_custom_call.1} parent=1 // loop_footer
      %s19 = sadd.s32 1, %s15
    $region7: #{tpu_custom_call.1} parent=1 // loop_footer_branch
      %14 = sbr.rel target = $region3
    $region8: #{tpu_custom_call.1} parent=1 // loop_exit
      _
    %348 = vsyncpa [#allocation3], 1
    %s349 = scalar_lea.sflag [#allocation3], 1
    %350 = vsyncpa %s349, 1
    %351 = vsyncpa [#allocation4], 1
    %s352 = scalar_lea.sflag [#allocation4], 1
    %353 = vsyncpa %s352, 1

</llo_original>
